<compile_context>
chip_gen: v5e
topology: v5e:2x2
jax: 0.10.0
libtpu: 0.0.40
codegen_flags: <defaults>
</compile_context>

<pallas_src>
import jax
import jax.numpy as jnp
from jax.experimental import pallas as pl
from jax.experimental.pallas import tpu as pltpu


def _logistic_kernel(x_ref, wt_ref, b_ref, o_ref):
    # x_ref:  [TB, F] VMEM (streamed, double-buffered)
    # wt_ref: [F, 1]  VMEM (constant index_map -> resident across the grid)
    # b_ref:  [1]     SMEM scalar
    # o_ref:  [TB, 1]
    z = jnp.dot(x_ref[...], wt_ref[...],
                preferred_element_type=jnp.float32)            # [TB, 1]
    o_ref[...] = jax.nn.sigmoid(z + b_ref[0]).astype(o_ref.dtype)


def _round_up(v, m):
    return ((v + m - 1) // m) * m


def logistic_classifier(x, weight, bias, *, x_vmem_budget_bytes=24 << 20):
    """Forward pass of LogisticClassifier: sigmoid(x @ weight.T + bias).

    x:      [B, F]
    weight: [1, F]  (PyTorch nn.Linear layout)
    bias:   [1]
    returns [B, 1] float32
    """
    B, F = x.shape
    itemsize = jnp.dtype(x.dtype).itemsize
    f_padded = _round_up(F, 128)              # lane padding of a [TB, F] VMEM tile
    row_bytes = f_padded * itemsize

    # Largest batch tile whose double-buffered x footprint fits the budget.
    tb_cap = max(8, (x_vmem_budget_bytes // (2 * row_bytes)) // 8 * 8)
    # Keep nb >= 2 when B allows it, so the "parallel" batch axis can be
    # sharded across v7x's two TensorCores.
    tb_target = _round_up(pl.cdiv(B, 2), 8) if B >= 16 else _round_up(B, 8)
    TB = max(8, min(tb_cap, tb_target))
    nb = pl.cdiv(B, TB)

    # Pre-transpose the (tiny) weight so the kernel has no x-tile transpose.
    wT = weight.T.astype(x.dtype)             # [F, 1]

    # Scoped-VMEM limit: double-buffered x + headroom, capped well under the
    # v7x 64 MiB physical ceiling (also lifts v5e's 16 MiB default).
    vmem_limit = max(16 << 20,
                     min(int(2 * TB * row_bytes * 1.5) + (4 << 20), 56 << 20))

    out = pl.pallas_call(
        _logistic_kernel,
        out_shape=jax.ShapeDtypeStruct((B, 1), jnp.float32),
        grid_spec=pltpu.PrefetchScalarGridSpec(
            num_scalar_prefetch=0,
            grid=(nb,),
            in_specs=[
                # X tile: streamed over the batch grid, full feature width.
                pl.BlockSpec((TB, F), lambda i: (i, 0)),
                # Transposed weight: constant index_map -> DMA'd once, resident.
                pl.BlockSpec((F, 1), lambda i: (0, 0)),
                # Bias: scalar in SMEM.
                pl.BlockSpec(memory_space=pltpu.MemorySpace.SMEM),
            ],
            out_specs=pl.BlockSpec((TB, 1), lambda i: (i, 0)),
        ),
        compiler_params=pltpu.CompilerParams(
            dimension_semantics=("parallel",),
            vmem_limit_bytes=vmem_limit,
        ),
    )(x, wT, bias)
    return out


if __name__ == "__main__":
    key = jax.random.PRNGKey(0)
    kx, kw, kb = jax.random.split(key, 3)

    # Small shapes consistent with the module: batch=8, num_feature=32.
    B, F = 8, 32
    x = jax.random.normal(kx, (B, F), dtype=jnp.float32)
    bound = 1.0 / (F ** 0.5)
    weight = jax.random.uniform(kw, (1, F), minval=-bound, maxval=bound,
                                dtype=jnp.float32)
    bias = jax.random.uniform(kb, (1,), minval=-bound, maxval=bound,
                              dtype=jnp.float32)

    out = jax.block_until_ready(logistic_classifier(x, weight, bias))
    ref = jax.nn.sigmoid(x @ weight.T + bias)
    assert out.shape == (B, 1)
    assert jnp.allclose(out, ref, atol=1e-5, rtol=1e-5), \
        float(jnp.max(jnp.abs(out - ref)))

    # Second check: multi-tile grid + ragged (non-multiple-of-TB) batch edge,
    # exercising the no-pad edge-block path.
    B2, F2 = 650, 96
    x2 = jax.random.normal(kx, (B2, F2), dtype=jnp.float32)
    bound2 = 1.0 / (F2 ** 0.5)
    w2 = jax.random.uniform(kw, (1, F2), minval=-bound2, maxval=bound2,
                            dtype=jnp.float32)
    b2 = jax.random.uniform(kb, (1,), minval=-bound2, maxval=bound2,
                            dtype=jnp.float32)
    out2 = jax.block_until_ready(logistic_classifier(x2, w2, b2))
    ref2 = jax.nn.sigmoid(x2 @ w2.T + b2)
    assert out2.shape == (B2, 1)
    assert jnp.allclose(out2, ref2, atol=1e-5, rtol=1e-5), \
        float(jnp.max(jnp.abs(out2 - ref2)))

    print("KERNEL_OK")
</pallas_src>

<mosaic_0001>
module attributes {stable_mosaic.version = 11 : i64} {
  func.func @_logistic_kernel(%arg0: i32, %arg1: memref<8x32xf32, #tpu.memory_space<vmem>>, %arg2: memref<32x1xf32, #tpu.memory_space<vmem>>, %arg3: memref<1xf32, #tpu.memory_space<smem>>, %arg4: memref<8x1xf32, #tpu.memory_space<vmem>>) attributes {dimension_semantics = [#tpu.dimension_semantics<parallel>], iteration_bounds = array<i64: 1>, scalar_prefetch = 0 : i64, scratch_operands = 0 : i64, tpu.core_type = #tpu.core_type<tc>, window_params = [{transform_indices = @transform_0, window_bounds = array<i64: 8, 32>}, {pipeline_mode = #tpu.pipeline_mode<synchronous>, transform_indices = @transform_1, window_bounds = array<i64: 32, 1>}, {transform_indices = @transform_2, window_bounds = array<i64: 1>}, {transform_indices = @transform_3, window_bounds = array<i64: 8, 1>}]} {
    %c0 = arith.constant 0 : index
    %c0_0 = arith.constant 0 : index
    %0 = vector.load %arg1[%c0, %c0_0] : memref<8x32xf32, #tpu.memory_space<vmem>>, vector<8x32xf32>
    %c0_1 = arith.constant 0 : index
    %c0_2 = arith.constant 0 : index
    %1 = vector.load %arg2[%c0_1, %c0_2] : memref<32x1xf32, #tpu.memory_space<vmem>>, vector<32x1xf32>
    %cst = arith.constant dense<0.000000e+00> : vector<8x1xf32>
    %2 = tpu.matmul %0, %1, %cst {dimension_numbers = #tpu.dot_dimension_numbers<[1], [0], [0], [1], [0, 0, 1, 1], [], []>} : vector<8x32xf32>, vector<32x1xf32>, vector<8x1xf32> -> vector<8x1xf32>
    %c0_3 = arith.constant 0 : index
    %3 = memref.load %arg3[%c0_3] : memref<1xf32, #tpu.memory_space<smem>>
    %4 = vector.broadcast %3 : f32 to vector<8x1xf32>
    %5 = arith.addf %2, %4 : vector<8x1xf32>
    %6 = arith.negf %5 : vector<8x1xf32>
    %7 = math.exp %6 : vector<8x1xf32>
    %cst_4 = arith.constant 1.000000e+00 : f32
    %8 = vector.broadcast %cst_4 : f32 to vector<8x1xf32>
    %9 = arith.addf %8, %7 : vector<8x1xf32>
    %10 = arith.divf %8, %9 : vector<8x1xf32>
    %c0_5 = arith.constant 0 : index
    %c0_6 = arith.constant 0 : index
    %11 = vector.load %arg4[%c0_5, %c0_6] : memref<8x1xf32, #tpu.memory_space<vmem>>, vector<8x1xf32>
    tpu.vector_store %arg4[%c0_5, %c0_6], %10 {strides = array<i32>} : memref<8x1xf32, #tpu.memory_space<vmem>>, vector<8x1xf32>,
    return
  }
  func.func @transform_0(%arg0: i32) -> (i32, i32) {
    %c0_i32 = arith.constant 0 : i32
    %c0_i32_0 = arith.constant 0 : i32
    return %arg0, %c0_i32 : i32, i32
  }
  func.func @transform_1(%arg0: i32) -> (i32, i32) {
    %c0_i32 = arith.constant 0 : i32
    %c0_i32_0 = arith.constant 0 : i32
    %c0_i32_1 = arith.constant 0 : i32
    return %c0_i32, %c0_i32_0 : i32, i32
  }
  func.func @transform_2(%arg0: i32) -> i32 {
    %c0_i32 = arith.constant 0 : i32
    %c0_i32_0 = arith.constant 0 : i32
    return %c0_i32 : i32
  }
  func.func @transform_3(%arg0: i32) -> (i32, i32) {
    %c0_i32 = arith.constant 0 : i32
    %c0_i32_0 = arith.constant 0 : i32
    return %arg0, %c0_i32 : i32, i32
  }
}

</mosaic_0001>

<llo_original>
// kernel: tpu_custom_call.1
$region0: #{tpu_custom_call.1}
  #allocation0 [shape = 'u32[]', space=smem, size = 0x4, offset = 0x4, fixed_abs, tag = 'smem constant byte address 0x4 - core index']
  #allocation1 [shape = 'u32[72,128]{1,0:T(1,128)}', space=vmem, size = 0x9000, scoped, tag = 'internal scratch']
  #allocation2 [shape = 'f32[1]{0:T(128)S(6)}', space=smem, size = 0x200, scoped, tag = 'scoped memory for tpu_custom_call.1']
  %s0 = inlined_call_operand.vmem [shape: f32[8,32], index: 0, kind: input, shape index: {}]
  %s1 = inlined_call_operand.vmem [shape: f32[32,1], index: 1, kind: input, shape index: {}]
  %s2 = inlined_call_operand.<no memory space> [shape: f32[1], index: 2, kind: input, shape index: {}]
  %s3 = inlined_call_operand.vmem [shape: f32[8,1], index: 3, kind: output, shape index: {}]
  %s4 = sld [smem:[#allocation0]]
  $region22: #{tpu_custom_call.1} parent=0
    _
  %s6 = ssub.s32 1, %s4
  %s7 = scalar_select 0, %s6, %s4
  %8 = sst [smem:[#allocation2]] %s2
  // Predicated region
  $region2: #{tpu_custom_call.1} parent=0 // pred_check
    _
  $region3: #{tpu_custom_call.1} parent=0 // pred_check_branch
    %10 = sbr.rel (0) target = $region5
  $region4: #{tpu_custom_call.1} parent=0 // pred_region
    _
  $region5: #{tpu_custom_call.1} parent=0 // pred_fallthru
    _
  // Predicated region
  $region6: #{tpu_custom_call.1} parent=0 // pred_check
    _
  $region7: #{tpu_custom_call.1} parent=0 // pred_check_branch
    %12 = sbr.rel (0) target = $region9
  $region8: #{tpu_custom_call.1} parent=0 // pred_region
    _
  $region9: #{tpu_custom_call.1} parent=0 // pred_fallthru
    _
  // Predicated region
  $region10: #{tpu_custom_call.1} parent=0 // pred_check
    _
  $region11: #{tpu_custom_call.1} parent=0 // pred_check_branch
    %14 = sbr.rel (0) target = $region13
  $region12: #{tpu_custom_call.1} parent=0 // pred_region
    _
  $region13: #{tpu_custom_call.1} parent=0 // pred_fallthru
    _
  %v15 = vld [vmem:[%s0] sm:$0xff]
  %v16 = vld [vmem:[%s1] sm:$0xff]
  %v17 = vld [vmem:[%s1 + $0x8] sm:$0xff]
  %v18 = vld [vmem:[%s1 + $0x10] sm:$0xff]
  %v19 = vld [vmem:[%s1 + $0x18] sm:$0xff]
  %s20 = sld [smem:[#allocation2]]
  %v21 = vstv %s20
  %vm22 = vcmask 261120
  %v24 = vsel %vm22, %v15, 0
  %26 = vmatpush.msra.mxu0 0.0
  %27 = vmatpush.msra.mxu0 0.0
  %28 = vmatpush.msra.mxu0 0.0
  %29 = vmatpush.msra.mxu0 0.0
  %30 = vmatpush.msra.mxu0 0.0
  %31 = vmatpush.msra.mxu0 0.0
  %32 = vmatpush.msra.mxu0 0.0
  %33 = vmatpush.msra.mxu0 0.0
  %34 = vmatpush.msra.mxu0 0.0
  %35 = vmatpush.msra.mxu0 0.0
  %36 = vmatpush.msra.mxu0 0.0
  %37 = vmatpush.msra.mxu0 0.0
  %38 = vmatpush.msra.mxu0 %v19
  %39 = vmatpush.msra.mxu0 %v18
  %40 = vmatpush.msra.mxu0 %v17
  %41 = vmatpush.msra.mxu0 %v16
  %42 = vmatmul.f32.gmra.mxu0 %v24
  %v43 = vpop.f32.mrf.mxu0
  %v44 = vadd.f32 %v21, %v43
  %45 = vdwg.mxu0
  %v46 = vxor.u32 %v44, 2147483648
  %v47 = vmul.f32 %v46, 1.442695
  %v48 = vpow.pop %v47
  %v49 = vadd.f32 %v48, 1.0
  %v50 = vrcp.pop %v49
  %v51 = vmul.f32 %v49, %v50
  %v52 = vsub.f32 1.0, %v51
  %v53 = vmul.f32 %v50, %v52
  %v54 = vadd.f32 %v50, %v53
  %vm55 = vweird.f32 %v49
  %vm56 = vweird.f32 %v50
  %vm57 = vmor %vm55, %vm56
  %v58 = vsel %vm57, %v50, %v54
  %v59 = vand.u32 2147483647, %v49
  %vm60 = vcmp.eq.f32.partialorder %v59, 8.507059e+37
  %v61 = vand.u32 %v49, 2147483648
  %v62 = vor.u32 1.1754944e-38, %v61
  %v63 = vsel %vm60, %v62, %v58
  %v64 = vmul.f32 1.0, %v63
  %vm65 = vcmask 7168
  %66 = vst.msk [vmem:[%s3] sm:$0xff] %vm65, %v64
  // Predicated region
  $region14: #{tpu_custom_call.1} parent=0 // pred_check
    _
  $region15: #{tpu_custom_call.1} parent=0 // pred_check_branch
    %68 = sbr.rel (0) target = $region17
  $region16: #{tpu_custom_call.1} parent=0 // pred_region
    _
  $region17: #{tpu_custom_call.1} parent=0 // pred_fallthru
    _
  // Predicated region
  $region18: #{tpu_custom_call.1} parent=0 // pred_check
    _
  $region19: #{tpu_custom_call.1} parent=0 // pred_check_branch
    %70 = sbr.rel (0) target = $region21
  $region20: #{tpu_custom_call.1} parent=0 // pred_region
    _
  $region21: #{tpu_custom_call.1} parent=0 // pred_fallthru
    _

</llo_original>
